<compile_context>
chip_gen: v5e
topology: v5e:2x2
jax: 0.10.0
libtpu: 0.0.40
codegen_flags: <defaults>
</compile_context>

<pallas_src>
import functools
import math

import jax
import jax.numpy as jnp
from jax.experimental import pallas as pl
from jax.experimental.pallas import tpu as pltpu


def _round_up(x, m):
    return ((x + m - 1) // m) * m


def _pack_flat(total, lane_blk_max):
    """Pick (lane_blk, padded, rows) so a flat array packs into (rows, lane_blk)
    slabs processed 8 rows (one full sublane tile) per grid step."""
    lane_blk = min(lane_blk_max, _round_up(-(-total // 8), 128))
    padded = _round_up(total, 8 * lane_blk)
    rows = padded // lane_blk
    return lane_blk, padded, rows


# ---------------------------------------------------------------------------
# Kernel 1: sdf_reg_loss_batch
#   masked BCE-with-logits over edges whose two endpoint SDFs have opposite sign
# ---------------------------------------------------------------------------
def _sdf_reg_kernel(a_ref, b_ref, sum_a_ref, sum_b_ref, cnt_ref):
    @pl.when(pl.program_id(0) == 0)
    def _():
        sum_a_ref[...] = jnp.zeros_like(sum_a_ref)
        sum_b_ref[...] = jnp.zeros_like(sum_b_ref)
        cnt_ref[...] = jnp.zeros_like(cnt_ref)

    a = a_ref[...]                       # (8, L) fully packed vregs
    b = b_ref[...]
    # torch.sign semantics: a zero endpoint vs a nonzero endpoint counts as a crossing.
    m = (jnp.sign(a) != jnp.sign(b)).astype(jnp.float32)
    t_a = (a > 0).astype(jnp.float32)
    t_b = (b > 0).astype(jnp.float32)
    # BCE-with-logits(x, t) = max(x,0) - x*t + log(1 + exp(-|x|)).
    # exp(-|x|) in (0, 1], so log(1 + y) is numerically safe; exp/log go to the EUP slot.
    bce_a = jnp.maximum(a, 0.0) - a * t_b + jnp.log(1.0 + jnp.exp(-jnp.abs(a)))
    bce_b = jnp.maximum(b, 0.0) - b * t_a + jnp.log(1.0 + jnp.exp(-jnp.abs(b)))
    sum_a_ref[...] += jnp.sum(bce_a * m, keepdims=True)
    sum_b_ref[...] += jnp.sum(bce_b * m, keepdims=True)
    cnt_ref[...] += jnp.sum(m, keepdims=True)


def sdf_reg_loss_batch(sdf, all_edges, *, lane_blk_max=4096):
    """Pallas port of core.models.sdf_reg_loss_batch (flattened over batch+edges,
    matching torch's global masked-mean reduction)."""
    B = sdf.shape[0]
    sdf2 = sdf.reshape(B, -1)
    # TODO(synk): for production edge counts, fuse this gather into the kernel via
    # PrefetchScalarGridSpec; at E~2K the XLA gather is cheaper than the plumbing.
    gathered = jnp.take(sdf2, all_edges.reshape(-1), axis=1).reshape(B, -1, 2)
    a = gathered[:, :, 0].reshape(-1)
    b = gathered[:, :, 1].reshape(-1)

    total = a.shape[0]
    lane_blk, padded, rows = _pack_flat(total, lane_blk_max)
    # Pad both endpoints with +1.0: equal signs => padded lanes never count.
    a = jnp.pad(a, (0, padded - total), constant_values=1.0).reshape(rows, lane_blk)
    b = jnp.pad(b, (0, padded - total), constant_values=1.0).reshape(rows, lane_blk)

    blk = pl.BlockSpec((8, lane_blk), lambda i: (i, 0))
    acc = pl.BlockSpec((1, 1), lambda i: (0, 0))
    sum_a, sum_b, cnt = pl.pallas_call(
        _sdf_reg_kernel,
        out_shape=tuple(jax.ShapeDtypeStruct((1, 1), jnp.float32) for _ in range(3)),
        grid=(rows // 8,),
        in_specs=[blk, blk],
        out_specs=(acc, acc, acc),
        compiler_params=pltpu.CompilerParams(dimension_semantics=("arbitrary",)),
    )(a, b)
    # torch mean-reduction would be NaN for zero crossings; clamp denominator.
    denom = jnp.maximum(cnt[0, 0], 1.0)
    return sum_a[0, 0] / denom + sum_b[0, 0] / denom


# ---------------------------------------------------------------------------
# Kernel 2: per-batch SDF statistics (interior pos/neg counts, |sdf| sum)
# ---------------------------------------------------------------------------
def _sdf_stats_kernel(sdf_ref, interior_ref, pos_ref, neg_ref, abs_ref):
    @pl.when(pl.program_id(0) == 0)
    def _():
        pos_ref[...] = jnp.zeros_like(pos_ref)
        neg_ref[...] = jnp.zeros_like(neg_ref)
        abs_ref[...] = jnp.zeros_like(abs_ref)

    sdf = sdf_ref[...]           # (B, 8, L) — fully packed (8, L) tiles per batch
    interior = interior_ref[...]  # (1, 8, L) — broadcast over batch, free VPU operand
    pos_ref[...] += jnp.sum((sdf > 0).astype(jnp.float32) * interior, axis=-1, keepdims=True)
    neg_ref[...] += jnp.sum((sdf < 0).astype(jnp.float32) * interior, axis=-1, keepdims=True)
    # zero padding contributes 0 to |sdf|, pos and neg: no `valid` stream needed.
    abs_ref[...] += jnp.sum(jnp.abs(sdf), axis=-1, keepdims=True)


def _sdf_stats(sdf, interior_mask, *, lane_blk_max=4096):
    B, N = sdf.shape
    lane_blk = min(lane_blk_max, _round_up(-(-N // 8), 128))
    Np = _round_up(N, 8 * lane_blk)
    # Contiguous reshapes are free at the HBM level.
    sdf_p = jnp.pad(sdf.astype(jnp.float32), ((0, 0), (0, Np - N))).reshape(B, 8, Np // 8)
    interior = jnp.pad(interior_mask.astype(jnp.float32), (0, Np - N)).reshape(1, 8, Np // 8)

    sdf_blk = pl.BlockSpec((B, 8, lane_blk), lambda c: (0, 0, c))
    int_blk = pl.BlockSpec((1, 8, lane_blk), lambda c: (0, 0, c))
    acc = pl.BlockSpec((B, 8, 1), lambda c: (0, 0, 0))
    pos, neg, abs_sum = pl.pallas_call(
        _sdf_stats_kernel,
        out_shape=tuple(jax.ShapeDtypeStruct((B, 8, 1), jnp.float32) for _ in range(3)),
        grid=((Np // 8) // lane_blk,),
        in_specs=[sdf_blk, int_blk],
        out_specs=(acc, acc, acc),
        compiler_params=pltpu.CompilerParams(dimension_semantics=("arbitrary",)),
    )(sdf_p, interior)
    # Tiny (B, 8) partial reduction finished in JAX.
    return pos.sum(axis=(1, 2)), neg.sum(axis=(1, 2)), abs_sum.sum(axis=(1, 2))


# ---------------------------------------------------------------------------
# Kernel 3: deformation activation  d -> scale * tanh(d)   (layout-agnostic)
# ---------------------------------------------------------------------------
def _deform_tanh_kernel(d_ref, o_ref, *, scale):
    o_ref[...] = scale * jnp.tanh(d_ref[...])


def _deform_scale(deformation, scale, *, lane_blk_max=8192):
    B, N, C3 = deformation.shape
    total = B * N * C3
    lane_blk, padded, rows = _pack_flat(total, lane_blk_max)
    flat = jnp.pad(deformation.astype(jnp.float32).reshape(-1), (0, padded - total))
    out = pl.pallas_call(
        functools.partial(_deform_tanh_kernel, scale=scale),
        out_shape=jax.ShapeDtypeStruct((rows, lane_blk), jnp.float32),
        grid=(rows // 8,),
        in_specs=[pl.BlockSpec((8, lane_blk), lambda i: (i, 0))],
        out_specs=pl.BlockSpec((8, lane_blk), lambda i: (i, 0)),
        compiler_params=pltpu.CompilerParams(dimension_semantics=("parallel",)),
    )(flat.reshape(rows, lane_blk))
    return out.reshape(-1)[:total].reshape(B, N, C3)


# ---------------------------------------------------------------------------
# Kernel 4: fused image compositing + MSE reductions
#   pred_images = shading * albedo; GT composited with bg=1 in-kernel;
#   depth negation folded in; mask broadcast done in-register (no gt_mask3 in HBM).
# ---------------------------------------------------------------------------
def _mesh_loss_kernel(shade_ref, alb_ref, alpha_ref, depth_ref,
                      gt_img_ref, gt_alb_ref, gt_mask_ref, gt_depth_ref,
                      pred_img_ref, sse_img_ref, sse_alpha_ref, sse_alb_ref, sse_depth_ref,
                      *, n_ch):
    @pl.when(pl.program_id(0) == 0)
    def _():
        sse_img_ref[...] = jnp.zeros_like(sse_img_ref)
        sse_alpha_ref[...] = jnp.zeros_like(sse_alpha_ref)
        sse_alb_ref[...] = jnp.zeros_like(sse_alb_ref)
        sse_depth_ref[...] = jnp.zeros_like(sse_depth_ref)

    shade = shade_ref[...]       # (Gblk, C*HW)
    alb = alb_ref[...]           # (Gblk, C*HW)
    alpha = alpha_ref[...]       # (Gblk, HW)
    depth = depth_ref[...]       # (Gblk, HW)   raw render depth; pred_depth = -depth
    gt_img = gt_img_ref[...]     # (Gblk, C*HW)
    gt_alb = gt_alb_ref[...]     # (Gblk, C*HW)
    m1 = gt_mask_ref[...]        # (Gblk, HW)
    gt_depth = gt_depth_ref[...]  # (Gblk, HW)

    # Channel-major lane layout: index = c*HW + p, so lane-tiling the mask C times
    # aligns it with every channel. In-register, no HBM traffic.
    m3 = jnp.tile(m1, (1, n_ch))

    pred_img = shade * alb                          # pred_images = shading * albedos
    gt_img_c = gt_img * m3 + (1.0 - m3)             # bg_color = ones(3)
    gt_alb_c = gt_alb * m3 + (1.0 - m3)
    pred_img_ref[...] = pred_img

    d_img = pred_img - gt_img_c
    d_alpha = alpha - m1
    d_alb = alb - gt_alb_c
    d_depth = depth + gt_depth                      # (-depth) - gt_depth, squared below
    sse_img_ref[...] += jnp.sum(d_img * d_img, keepdims=True)
    sse_alpha_ref[...] += jnp.sum(d_alpha * d_alpha, keepdims=True)
    sse_alb_ref[...] += jnp.sum(d_alb * d_alb, keepdims=True)
    sse_depth_ref[...] += jnp.sum(d_depth * d_depth, keepdims=True)


def fused_image_loss(shading, albedo, alpha, depth_raw, gt_img, gt_alb, gt_mask, gt_depth):
    B, NV, C, H, W = shading.shape
    G, HW = B * NV, H * W

    def flat3(x):
        return x.reshape(G, C * HW).astype(jnp.float32)

    def flat1(x):
        return x.reshape(G, HW).astype(jnp.float32)

    # Several images per grid step; lane-dense (Gblk, C*HW) output blocks.
    # NOTE: for production resolutions (HW=65536+) split the HW axis and set
    # vmem_limit_bytes explicitly so v7x's 64 MiB VMEM is respected.
    Gblk = math.gcd(G, 8)
    s3 = pl.BlockSpec((Gblk, C * HW), lambda i: (i, 0))
    s1 = pl.BlockSpec((Gblk, HW), lambda i: (i, 0))
    acc = pl.BlockSpec((1, 1), lambda i: (0, 0))
    out_shapes = (jax.ShapeDtypeStruct((G, C * HW), jnp.float32),) + tuple(
        jax.ShapeDtypeStruct((1, 1), jnp.float32) for _ in range(4))

    pred_img, sse_img, sse_alpha, sse_alb, sse_depth = pl.pallas_call(
        functools.partial(_mesh_loss_kernel, n_ch=C),
        out_shape=out_shapes,
        grid=(G // Gblk,),
        in_specs=[s3, s3, s1, s1, s3, s3, s1, s1],
        out_specs=(s3, acc, acc, acc, acc),
        compiler_params=pltpu.CompilerParams(dimension_semantics=("arbitrary",)),
    )(flat3(shading), flat3(albedo), flat1(alpha), flat1(depth_raw),
      flat3(gt_img), flat3(gt_alb), flat1(gt_mask), flat1(gt_depth))

    n_img = float(G * C * HW)
    n_ch1 = float(G * HW)
    mse_img = sse_img[0, 0] / n_img
    mse_alpha = sse_alpha[0, 0] / n_ch1
    mse_alb = sse_alb[0, 0] / n_img
    mse_depth = sse_depth[0, 0] / n_ch1
    return pred_img.reshape(B, NV, C, H, W), mse_img, mse_alpha, mse_alb, mse_depth


# ---------------------------------------------------------------------------
# LDM_Mesh.get_sdf_deformation_prediction (post-TensorRF math), Pallas-backed
# ---------------------------------------------------------------------------
def get_sdf_deformation_prediction(sdf, deformation, geometry,
                                   grid_res, deformation_multiplier):
    B, N = sdf.shape
    scale = 1.0 / (grid_res * deformation_multiplier)
    deformation = _deform_scale(deformation, scale)

    pos, neg, abs_sum = _sdf_stats(sdf, geometry["interior_mask"])
    zero_surface = jnp.logical_or(pos == 0, neg == 0)           # (B,)
    sdf_abs_mean = abs_sum / float(N)

    max_sdf = jnp.max(sdf)
    min_sdf = jnp.min(sdf)
    update_sdf = jnp.zeros((1, N), jnp.float32)
    update_sdf = update_sdf.at[:, geometry["center_indices"]].add(1.0 - min_sdf)
    update_sdf = update_sdf.at[:, geometry["boundary_indices"]].add(-1.0 - max_sdf)
    zs = zero_surface.astype(jnp.float32)[:, None]
    new_sdf = zs * update_sdf                                    # (B, N)
    update_mask = (new_sdf == 0).astype(jnp.float32)
    sdf_reg_loss = sdf_abs_mean * zero_surface.astype(jnp.float32)
    sdf = sdf * update_mask + new_sdf * (1.0 - update_mask)
    return sdf, deformation, sdf_reg_loss


# ---------------------------------------------------------------------------
# Forward (mirrors LDM_Mesh.forward loss path)
# ---------------------------------------------------------------------------
def ldm_mesh_forward(params, data, geometry, *, grid_res, deformation_multiplier):
    results = {}

    # forward_svd_volume:
    # TODO(synk): LDM_SVD_Net (DINO/ViT encoder + transformer) has no clean Pallas
    # equivalent here; the triplane/line tensors are deterministic parameters.
    results["svd_volume"] = {
        "app_planes": params["app_planes"],
        "app_lines": params["app_lines"],
        "density_planes": params["density_planes"],
        "density_lines": params["density_lines"],
    }

    # TODO(synk): TensorVMSplit_Mesh.get_geometry_prediction (triplane sampling MLP)
    # is replaced by deterministic synthetic sdf/deformation/weight fields.
    sdf_raw = params["sdf_raw"]                  # (B, N)
    deformation_raw = params["deformation_raw"]  # (B, N, 3)
    weight = params["weight"]                    # (B, n_cubes, 21)

    sdf, deformation, _sdf_reg_geom = get_sdf_deformation_prediction(
        sdf_raw, deformation_raw, geometry, grid_res, deformation_multiplier)
    v_deformed = geometry["verts"][None] + deformation
    results["sdf"] = sdf
    results["v_deformed"] = v_deformed

    # TODO(synk): FlexiCubes mesh extraction + nvdiffrast rasterization (get_mesh /
    # render_mesh) have no Pallas equivalent; renderer G-buffers come from `data`.
    flexicubes_surface_reg = jnp.float32(0.0)
    flexicubes_weight_reg = jnp.mean(weight ** 2)   # tiny glue reduction

    pred_shading = data["render_shading"]           # (B, NV, 3, H, W)
    pred_albedos = data["render_albedo"]            # (B, NV, 3, H, W)
    pred_alphas = data["render_mask"]               # (B, NV, 1, H, W)
    # Depth negation is folded into the fused loss kernel (no wrapper pass).
    # TODO(synk): normalize_depth is an undefined external helper; omitted.

    pred_images, mse_img, mse_alpha, mse_alb, mse_depth = fused_image_loss(
        pred_shading, pred_albedos, pred_alphas, data["render_depth"],
        data["images_output"], data["albedos_output"],
        data["masks_output"], data["depth_output"])

    results["images_pred"] = pred_images
    results["alphas_pred"] = pred_alphas
    results["pred_albedos"] = pred_albedos
    results["pred_shading"] = pred_shading

    sdf_reg_loss_entropy = sdf_reg_loss_batch(sdf, geometry["all_edges"]) * 0.01
    loss_reg = (sdf_reg_loss_entropy
                + 0.5 * flexicubes_surface_reg
                + 0.1 * flexicubes_weight_reg)
    loss_mse = mse_img + mse_alpha + mse_alb
    loss = loss_mse + loss_reg + 0.5 * mse_depth
    # TODO(synk): LPIPS(VGG) perceptual loss not implementable without pretrained VGG.
    results["loss"] = loss
    results["psnr"] = -10.0 * jnp.log10(mse_img)
    return results


# ---------------------------------------------------------------------------
# Deterministic geometry / parameter construction
# ---------------------------------------------------------------------------
def build_geometry(grid_res, grid_scale, n_edges, key):
    n = grid_res + 1
    lin = jnp.linspace(-grid_scale / 2.0, grid_scale / 2.0, n)
    gx, gy, gz = jnp.meshgrid(lin, lin, lin, indexing="ij")
    verts = jnp.stack([gx, gy, gz], axis=-1).reshape(-1, 3).astype(jnp.float32)
    idx = jnp.arange(n ** 3)
    i, j, k = idx // (n * n), (idx // n) % n, idx % n
    interior = ((i >= 1) & (i <= n - 2) & (j >= 1) & (j <= n - 2) & (k >= 1) & (k <= n - 2))
    boundary_indices = jnp.nonzero(~interior)[0]
    c = n // 2
    center_indices = jnp.array([c * n * n + c * n + c], dtype=jnp.int32)
    all_edges = jax.random.randint(key, (n_edges, 2), 0, n ** 3).astype(jnp.int32)
    return {
        "verts": verts,
        "interior_mask": interior,
        "boundary_indices": boundary_indices,
        "center_indices": center_indices,
        "all_edges": all_edges,
    }


if __name__ == "__main__":
    key = jax.random.PRNGKey(0)
    B, NV, H, W = 2, 2, 16, 16
    grid_res, grid_scale, deformation_multiplier = 8, 2.0, 4.0
    splat, app_n_comp, density_n_comp = 16, 8, 4
    n_verts = (grid_res + 1) ** 3
    n_cubes = grid_res ** 3

    keys = jax.random.split(key, 16)
    geometry = build_geometry(grid_res, grid_scale, n_edges=2048, key=keys[0])

    params = {
        "app_planes": 0.1 * jax.random.normal(keys[1], (B, 3, app_n_comp, splat, splat), jnp.float32),
        "app_lines": 0.1 * jax.random.normal(keys[2], (B, 3, app_n_comp, splat, 1), jnp.float32),
        "density_planes": 0.1 * jax.random.normal(keys[3], (B, 3, density_n_comp, splat, splat), jnp.float32),
        "density_lines": 0.1 * jax.random.normal(keys[4], (B, 3, density_n_comp, splat, 1), jnp.float32),
        # synthetic sphere SDF guarantees both signs exist in the interior
        "sdf_raw": (jnp.linalg.norm(geometry["verts"], axis=-1)[None] - 0.6
                    + 0.05 * jax.random.normal(keys[5], (B, n_verts), jnp.float32)),
        "deformation_raw": jax.random.normal(keys[6], (B, n_verts, 3), jnp.float32),
        "weight": 0.1 * jax.random.normal(keys[7], (B, n_cubes, 21), jnp.float32),
    }

    data = {
        "input": jax.random.uniform(keys[8], (B, NV, 3, H, W), jnp.float32),
        "render_shading": jax.random.uniform(keys[9], (B, NV, 3, H, W), jnp.float32),
        "render_albedo": jax.random.uniform(keys[10], (B, NV, 3, H, W), jnp.float32),
        "render_mask": jax.random.uniform(keys[11], (B, NV, 1, H, W), jnp.float32),
        "render_depth": jax.random.uniform(keys[12], (B, NV, 1, H, W), jnp.float32),
        "images_output": jax.random.uniform(keys[13], (B, NV, 3, H, W), jnp.float32),
        "albedos_output": jax.random.uniform(keys[14], (B, NV, 3, H, W), jnp.float32),
        "masks_output": (jax.random.uniform(keys[15], (B, NV, 1, H, W), jnp.float32) > 0.5
                         ).astype(jnp.float32),
        "depth_output": -jax.random.uniform(keys[12], (B, NV, 1, H, W), jnp.float32),
    }

    out = ldm_mesh_forward(params, data, geometry,
                           grid_res=grid_res,
                           deformation_multiplier=deformation_multiplier)
    jax.block_until_ready(out["loss"])
    assert jnp.isfinite(out["loss"]).item()
    assert out["images_pred"].shape == (B, NV, 3, H, W)
    print("KERNEL_OK")
</pallas_src>

<mosaic_0001>
module attributes {stable_mosaic.version = 11 : i64} {
  func.func @_deform_tanh_kernel(%arg0: i32, %arg1: memref<8x640xf32, #tpu.memory_space<vmem>>, %arg2: memref<8x640xf32, #tpu.memory_space<vmem>>) attributes {dimension_semantics = [#tpu.dimension_semantics<parallel>], iteration_bounds = array<i64: 1>, scalar_prefetch = 0 : i64, scratch_operands = 0 : i64, tpu.core_type = #tpu.core_type<tc>, window_params = [{transform_indices = @transform_0, window_bounds = array<i64: 8, 640>}, {transform_indices = @transform_1, window_bounds = array<i64: 8, 640>}]} {
    %c0 = arith.constant 0 : index
    %c0_0 = arith.constant 0 : index
    %0 = vector.load %arg1[%c0, %c0_0] : memref<8x640xf32, #tpu.memory_space<vmem>>, vector<8x640xf32>
    %1 = math.tanh %0 : vector<8x640xf32>
    %cst = arith.constant 3.125000e-02 : f32
    %2 = vector.broadcast %cst : f32 to vector<8x640xf32>
    %3 = arith.mulf %2, %1 : vector<8x640xf32>
    %c0_1 = arith.constant 0 : index
    %c0_2 = arith.constant 0 : index
    %4 = vector.load %arg2[%c0_1, %c0_2] : memref<8x640xf32, #tpu.memory_space<vmem>>, vector<8x640xf32>
    tpu.vector_store %arg2[%c0_1, %c0_2], %3 {strides = array<i32>} : memref<8x640xf32, #tpu.memory_space<vmem>>, vector<8x640xf32>,
    return
  }
  func.func @transform_0(%arg0: i32) -> (i32, i32) {
    %c0_i32 = arith.constant 0 : i32
    %c0_i32_0 = arith.constant 0 : i32
    return %arg0, %c0_i32 : i32, i32
  }
  func.func @transform_1(%arg0: i32) -> (i32, i32) {
    %c0_i32 = arith.constant 0 : i32
    %c0_i32_0 = arith.constant 0 : i32
    return %arg0, %c0_i32 : i32, i32
  }
}

</mosaic_0001>

<llo_original>
// kernel: tpu_custom_call.1
$region0: #{tpu_custom_call.1}
  #allocation0 [shape = 'u32[]', space=smem, size = 0x4, offset = 0x4, fixed_abs, tag = 'smem constant byte address 0x4 - core index']
  #allocation1 [shape = 'u32[72,128]{1,0:T(1,128)}', space=vmem, size = 0x9000, scoped, tag = 'internal scratch']
  %s0 = inlined_call_operand.hbm [shape: f32[8,640], index: 0, kind: input, shape index: {}]
  %s1 = inlined_call_operand.hbm [shape: f32[8,640], index: 1, kind: output, shape index: {}]
  %s2 = sld [smem:[#allocation0]]
  $region18: #{tpu_custom_call.1} parent=0
    _
  %s4 = ssub.s32 1, %s2
  %s5 = scalar_select 0, %s4, %s2
  $region1: #{tpu_custom_call.1} parent=0
    #allocation2 [shape = 'u8[20480]{0}', space=vmem, size = 0x5000, scoped, tag = 'input window, operand 0, single buffered']
    #allocation3 [shape = 's32[1]{0}', space=sflag, size = 0x4, scoped, tag = 'scoped memory for tpu_custom_call.1']
    #allocation4 [shape = 's32[1]{0}', space=sflag, size = 0x4, scoped, tag = 'scoped memory for tpu_custom_call.1']
    #allocation5 [shape = 'u8[20480]{0}', space=vmem, size = 0x5000, scoped, tag = 'output window, operand 0, single buffered']
    %6 = vsyncpa [#allocation3], 0
    %7 = vsyncpa [#allocation4], 0
    // Predicated region
    $region2: #{tpu_custom_call.1} parent=1 // pred_check
      _
    $region3: #{tpu_custom_call.1} parent=1 // pred_check_branch
      %9 = sbr.rel (0) target = $region5
    $region4: #{tpu_custom_call.1} parent=1 // pred_region
      %11 = vsyncadd [#allocation3], 0
      %s13 = sshll.u32 %s0, 4
      %s14 = int_to_ptr.hbm [resolvable:$true] %s13
      %s15 = sshll.u32 [#allocation2], 4
      %s16 = int_to_ptr.vmem [resolvable:$true] %s15
      %18 = dma.hbm_to_vmem [thread:$0]  %s14, 640, %s16, [#allocation3]
    $region5: #{tpu_custom_call.1} parent=1 // pred_fallthru
      _
    // Predicated region
    $region6: #{tpu_custom_call.1} parent=1 // pred_check
      _
    $region7: #{tpu_custom_call.1} parent=1 // pred_check_branch
      %20 = sbr.rel (0) target = $region9
    $region8: #{tpu_custom_call.1} parent=1 // pred_region
      %22 = dma.done [#allocation3], 640
    $region9: #{tpu_custom_call.1} parent=1 // pred_fallthru
      _
    %v23 = vld [vmem:[#allocation2] sm:$0xff]
    %v24 = vld [vmem:[#allocation2 + $0x8] sm:$0xff]
    %v25 = vld [vmem:[#allocation2 + $0x10] sm:$0xff]
    %v26 = vld [vmem:[#allocation2 + $0x18] sm:$0xff]
    %v27 = vld [vmem:[#allocation2 + $0x20] sm:$0xff]
    %v28 = vtanh.pop %v23
    %v29 = vtanh.pop %v24
    %v30 = vtanh.pop %v25
    %v31 = vtanh.pop %v26
    %v32 = vtanh.pop %v27
    %v33 = vmul.f32 %v28, 0.03125
    %v34 = vmul.f32 %v29, 0.03125
    %v35 = vmul.f32 %v30, 0.03125
    %v36 = vmul.f32 %v31, 0.03125
    %v37 = vmul.f32 %v32, 0.03125
    %38 = vst [vmem:[#allocation5] sm:$0xff] %v33
    %39 = vst [vmem:[#allocation5 + $0x8] sm:$0xff] %v34
    %40 = vst [vmem:[#allocation5 + $0x10] sm:$0xff] %v35
    %41 = vst [vmem:[#allocation5 + $0x18] sm:$0xff] %v36
    %42 = vst [vmem:[#allocation5 + $0x20] sm:$0xff] %v37
    // Predicated region
    $region10: #{tpu_custom_call.1} parent=1 // pred_check
      _
    $region11: #{tpu_custom_call.1} parent=1 // pred_check_branch
      %44 = sbr.rel (0) target = $region13
    $region12: #{tpu_custom_call.1} parent=1 // pred_region
      %46 = vsyncadd [#allocation4], 0
      %s48 = sshll.u32 [#allocation5], 4
      %s49 = int_to_ptr.vmem [resolvable:$true] %s48
      %s50 = sshll.u32 %s1, 4
      %s51 = int_to_ptr.hbm [resolvable:$true] %s50
      %53 = dma.vmem_to_hbm [thread:$0]  %s49, 640, %s51, [#allocation4]
    $region13: #{tpu_custom_call.1} parent=1 // pred_fallthru
      _
    // Predicated region
    $region14: #{tpu_custom_call.1} parent=1 // pred_check
      _
    $region15: #{tpu_custom_call.1} parent=1 // pred_check_branch
      %55 = sbr.rel (0) target = $region17
    $region16: #{tpu_custom_call.1} parent=1 // pred_region
      %57 = dma.done [#allocation4], 640
    $region17: #{tpu_custom_call.1} parent=1 // pred_fallthru
      _
    %58 = vsyncpa [#allocation3], 1
    %59 = vsyncpa [#allocation4], 1

</llo_original>
